<compile_context>
chip_gen: v5e
topology: v5e:2x2
jax: 0.10.0
libtpu: 0.0.40
codegen_flags: <defaults>
</compile_context>

<pallas_src>
import jax
import jax.numpy as jnp
from jax import lax
from jax.experimental import pallas as pl
from jax.experimental.pallas import tpu as pltpu


def _round_up(x, m):
    return (x + m - 1) // m * m


def _maybe_pad2d(a, rows, cols):
    r, c = a.shape
    if r == rows and c == cols:
        return a
    return jnp.pad(a, ((0, rows - r), (0, cols - c)))


def _scaled_linear_kernel_1k(x_ref, w_ref, scale_ref, o_ref):
    """Single-K-tile fast path: one (tm, tn) output tile, no scratch.

    x_ref: (tm, tk), w_ref: (tn, tk) [out,in], scale_ref: (1, tn), o_ref: (tm, tn)
    """
    acc = lax.dot_general(
        x_ref[...], w_ref[...],
        dimension_numbers=(((1,), (1,)), ((), ())),
        preferred_element_type=jnp.float32,
    )
    o_ref[...] = (acc * scale_ref[...]).astype(o_ref.dtype)


def _scaled_linear_kernel_mk(x_ref, w_ref, scale_ref, o_ref, acc_ref):
    """General path: accumulate over the K grid axis in an f32 VMEM scratch."""
    k = pl.program_id(2)

    @pl.when(k == 0)
    def _():
        acc_ref[...] = jnp.zeros_like(acc_ref)

    # Contract last dim of x with last dim of W  ->  (tm, tn), f32 accumulate.
    acc_ref[...] += lax.dot_general(
        x_ref[...], w_ref[...],
        dimension_numbers=(((1,), (1,)), ((), ())),
        preferred_element_type=jnp.float32,
    )

    @pl.when(k == pl.num_programs(2) - 1)
    def _():
        o_ref[...] = (acc_ref[...] * scale_ref[...]).astype(o_ref.dtype)


def wo_lora_injected_linear(x, weight, scale):
    """Forward of WoLoraInjectedLinear (bias=False):  (x @ weight.T) * scale.

    x:      [..., in_features]
    weight: [out_features, in_features]   (PyTorch nn.Linear layout, untouched)
    scale:  [out_features]
    returns [..., out_features]
    """
    orig_shape = x.shape
    in_f = orig_shape[-1]
    out_f = weight.shape[0]
    x2d = x.reshape(-1, in_f)
    M = x2d.shape[0]

    # Tile sizes: lane axis multiple of 128, sublane multiple of 8.
    tm = min(256, _round_up(M, 8))
    tn = min(256, _round_up(out_f, 128))
    tk = min(512, _round_up(in_f, 128))

    M_p = _round_up(M, tm)
    N_p = _round_up(out_f, tn)
    K_p = _round_up(in_f, tk)

    # Zero-padding keeps the math exact (padded K contributes 0; padded M/N
    # rows/cols are sliced off below).  Skipped entirely when already aligned.
    x_p = _maybe_pad2d(x2d, M_p, K_p)
    w_p = _maybe_pad2d(weight, N_p, K_p)
    s_p = _maybe_pad2d(scale.reshape(1, out_f), 1, N_p)

    gm, gn, gk = M_p // tm, N_p // tn, K_p // tk

    itemsize = jnp.dtype(x.dtype).itemsize
    cost = pl.CostEstimate(
        flops=2 * M_p * K_p * N_p,
        transcendentals=0,
        bytes_accessed=(x_p.size * x_p.dtype.itemsize
                        + w_p.size * w_p.dtype.itemsize
                        + s_p.size * s_p.dtype.itemsize
                        + M_p * N_p * itemsize),
    )

    if gk == 1:
        kernel = _scaled_linear_kernel_1k
        grid_spec = pltpu.PrefetchScalarGridSpec(
            num_scalar_prefetch=0,
            grid=(gm, gn),
            in_specs=[
                pl.BlockSpec((tm, tk), lambda i, j: (i, 0)),   # x
                pl.BlockSpec((tn, tk), lambda i, j: (j, 0)),   # weight [out,in]
                pl.BlockSpec((1, tn), lambda i, j: (0, j)),    # scale
            ],
            out_specs=pl.BlockSpec((tm, tn), lambda i, j: (i, j)),
        )
        dim_sem = ("parallel", "parallel")
    else:
        kernel = _scaled_linear_kernel_mk
        grid_spec = pltpu.PrefetchScalarGridSpec(
            num_scalar_prefetch=0,
            grid=(gm, gn, gk),
            in_specs=[
                pl.BlockSpec((tm, tk), lambda i, j, k: (i, k)),   # x
                pl.BlockSpec((tn, tk), lambda i, j, k: (j, k)),   # weight [out,in]
                pl.BlockSpec((1, tn), lambda i, j, k: (0, j)),    # scale
            ],
            out_specs=pl.BlockSpec((tm, tn), lambda i, j, k: (i, j)),
            scratch_shapes=[pltpu.VMEM((tm, tn), jnp.float32)],
        )
        dim_sem = ("parallel", "parallel", "arbitrary")

    out_p = pl.pallas_call(
        kernel,
        out_shape=jax.ShapeDtypeStruct((M_p, N_p), x.dtype),
        grid_spec=grid_spec,
        compiler_params=pltpu.CompilerParams(dimension_semantics=dim_sem),
        cost_estimate=cost,
    )(x_p, w_p, s_p)

    out = out_p[:M, :out_f]
    return out.reshape(*orig_shape[:-1], out_f)


if __name__ == "__main__":
    key = jax.random.PRNGKey(0)
    kx, kw, ks, kx2, kw2, ks2 = jax.random.split(key, 6)

    # Case 1: small shapes consistent with the module (batch=2, seq=8,
    # hidden=32) — exercises the scratch-free single-K-tile fast path.
    B, S = 2, 8
    in_f, out_f = 32, 32
    x = jax.random.normal(kx, (B, S, in_f), dtype=jnp.float32)
    w = jax.random.normal(kw, (out_f, in_f), dtype=jnp.float32) * 0.05
    # Module initializes scale = ones; use a non-trivial scale so the
    # per-feature multiply path is actually exercised.
    scale = 1.0 + 0.1 * jax.random.normal(ks, (out_f,), dtype=jnp.float32)

    out = jax.block_until_ready(wo_lora_injected_linear(x, w, scale))
    ref = jnp.einsum("bsk,nk->bsn", x, w,
                     precision=lax.Precision.HIGHEST) * scale
    assert out.shape == (B, S, out_f)
    assert jnp.allclose(out, ref, atol=1e-5, rtol=1e-5), (
        float(jnp.max(jnp.abs(out - ref))))

    # Case 2: larger reduction dim — exercises the K-accumulation path.
    in_f2, out_f2 = 1024, 64
    x2 = jax.random.normal(kx2, (B, S, in_f2), dtype=jnp.float32) * 0.1
    w2 = jax.random.normal(kw2, (out_f2, in_f2), dtype=jnp.float32) * 0.05
    scale2 = 1.0 + 0.1 * jax.random.normal(ks2, (out_f2,), dtype=jnp.float32)

    out2 = jax.block_until_ready(wo_lora_injected_linear(x2, w2, scale2))
    ref2 = jnp.einsum("bsk,nk->bsn", x2, w2,
                      precision=lax.Precision.HIGHEST) * scale2
    assert out2.shape == (B, S, out_f2)
    assert jnp.allclose(out2, ref2, atol=1e-4, rtol=1e-4), (
        float(jnp.max(jnp.abs(out2 - ref2))))

    print("KERNEL_OK")
</pallas_src>

<mosaic_0001>
module attributes {stable_mosaic.version = 11 : i64} {
  func.func @_scaled_linear_kernel_1k(%arg0: i32, %arg1: i32, %arg2: memref<16x128xf32, #tpu.memory_space<vmem>>, %arg3: memref<128x128xf32, #tpu.memory_space<vmem>>, %arg4: memref<1x128xf32, #tpu.memory_space<vmem>>, %arg5: memref<16x128xf32, #tpu.memory_space<vmem>>) attributes {dimension_semantics = [#tpu.dimension_semantics<parallel>, #tpu.dimension_semantics<parallel>], iteration_bounds = array<i64: 1, 1>, scalar_prefetch = 0 : i64, scratch_operands = 0 : i64, tpu.core_type = #tpu.core_type<tc>, window_params = [{transform_indices = @transform_0, window_bounds = array<i64: 16, 128>}, {transform_indices = @transform_1, window_bounds = array<i64: 128, 128>}, {transform_indices = @transform_2, window_bounds = array<i64: 1, 128>}, {transform_indices = @transform_3, window_bounds = array<i64: 16, 128>}]} {
    %c0 = arith.constant 0 : index
    %c0_0 = arith.constant 0 : index
    %0 = vector.load %arg2[%c0, %c0_0] : memref<16x128xf32, #tpu.memory_space<vmem>>, vector<16x128xf32>
    %c0_1 = arith.constant 0 : index
    %c0_2 = arith.constant 0 : index
    %1 = vector.load %arg3[%c0_1, %c0_2] : memref<128x128xf32, #tpu.memory_space<vmem>>, vector<128x128xf32>
    %cst = arith.constant dense<0.000000e+00> : vector<16x128xf32>
    %2 = tpu.matmul %0, %1, %cst {dimension_numbers = #tpu.dot_dimension_numbers<[1], [1], [0], [0], [0, 0, 1, 0], [], []>} : vector<16x128xf32>, vector<128x128xf32>, vector<16x128xf32> -> vector<16x128xf32>
    %c0_3 = arith.constant 0 : index
    %c0_4 = arith.constant 0 : index
    %3 = vector.load %arg4[%c0_3, %c0_4] : memref<1x128xf32, #tpu.memory_space<vmem>>, vector<1x128xf32>
    %4 = vector.broadcast %3 : vector<1x128xf32> to vector<16x128xf32>
    %5 = arith.mulf %2, %4 : vector<16x128xf32>
    %c0_5 = arith.constant 0 : index
    %c0_6 = arith.constant 0 : index
    %6 = vector.load %arg5[%c0_5, %c0_6] : memref<16x128xf32, #tpu.memory_space<vmem>>, vector<16x128xf32>
    tpu.vector_store %arg5[%c0_5, %c0_6], %5 {strides = array<i32>} : memref<16x128xf32, #tpu.memory_space<vmem>>, vector<16x128xf32>,
    return
  }
  func.func @transform_0(%arg0: i32, %arg1: i32) -> (i32, i32) {
    %c0_i32 = arith.constant 0 : i32
    %c0_i32_0 = arith.constant 0 : i32
    return %arg0, %c0_i32 : i32, i32
  }
  func.func @transform_1(%arg0: i32, %arg1: i32) -> (i32, i32) {
    %c0_i32 = arith.constant 0 : i32
    %c0_i32_0 = arith.constant 0 : i32
    return %arg1, %c0_i32 : i32, i32
  }
  func.func @transform_2(%arg0: i32, %arg1: i32) -> (i32, i32) {
    %c0_i32 = arith.constant 0 : i32
    %c0_i32_0 = arith.constant 0 : i32
    return %c0_i32, %arg1 : i32, i32
  }
  func.func @transform_3(%arg0: i32, %arg1: i32) -> (i32, i32) {
    %c0_i32 = arith.constant 0 : i32
    return %arg0, %arg1 : i32, i32
  }
}

</mosaic_0001>

<llo_original>
// kernel: tpu_custom_call.1
$region0: #{tpu_custom_call.1}
  #allocation0 [shape = 'u32[]', space=smem, size = 0x4, offset = 0x4, fixed_abs, tag = 'smem constant byte address 0x4 - core index']
  #allocation1 [shape = 'u32[72,128]{1,0:T(1,128)}', space=vmem, size = 0x9000, scoped, tag = 'internal scratch']
  %s0 = inlined_call_operand.hbm [shape: f32[16,128], index: 0, kind: input, shape index: {}]
  %s1 = inlined_call_operand.hbm [shape: f32[128,128], index: 1, kind: input, shape index: {}]
  %s2 = inlined_call_operand.vmem [shape: f32[1,128], index: 2, kind: input, shape index: {}]
  %s3 = inlined_call_operand.hbm [shape: f32[16,128], index: 3, kind: output, shape index: {}]
  %s4 = sld [smem:[#allocation0]]
  $region30: #{tpu_custom_call.1} parent=0
    _
  %s6 = ssub.s32 1, %s4
  %s7 = scalar_select 0, %s6, %s4
  $region1: #{tpu_custom_call.1} parent=0
    #allocation2 [shape = 'u8[8192]{0}', space=vmem, size = 0x2000, scoped, tag = 'input window, operand 0, single buffered']
    #allocation3 [shape = 's32[1]{0}', space=sflag, size = 0x4, scoped, tag = 'scoped memory for tpu_custom_call.1']
    #allocation4 [shape = 's32[1]{0}', space=sflag, size = 0x4, scoped, tag = 'scoped memory for tpu_custom_call.1']
    #allocation5 [shape = 'u8[65536]{0}', space=vmem, size = 0x10000, scoped, tag = 'input window, operand 1, single buffered']
    #allocation6 [shape = 's32[1]{0}', space=sflag, size = 0x4, scoped, tag = 'scoped memory for tpu_custom_call.1']
    #allocation7 [shape = 'u8[8192]{0}', space=vmem, size = 0x2000, scoped, tag = 'output window, operand 0, single buffered']
    %8 = vsyncpa [#allocation3], 0
    %9 = vsyncpa [#allocation6], 0
    %10 = vsyncpa [#allocation4], 0
    // Predicated region
    $region2: #{tpu_custom_call.1} parent=1 // pred_check
      _
    $region3: #{tpu_custom_call.1} parent=1 // pred_check_branch
      %12 = sbr.rel (0) target = $region5
    $region4: #{tpu_custom_call.1} parent=1 // pred_region
      %14 = vsyncadd [#allocation3], 0
      %s15 = sshll.u32 %s0, 4
      %s16 = int_to_ptr.hbm [resolvable:$true] %s15
      %s17 = sshll.u32 [#allocation2], 4
      %s18 = int_to_ptr.vmem [resolvable:$true] %s17
      %23 = dma.hbm_to_vmem [thread:$0]  %s16, 256, %s18, [#allocation3], 128, 128, 8
    $region5: #{tpu_custom_call.1} parent=1 // pred_fallthru
      _
    // Predicated region
    $region6: #{tpu_custom_call.1} parent=1 // pred_check
      _
    $region7: #{tpu_custom_call.1} parent=1 // pred_check_branch
      %25 = sbr.rel (0) target = $region9
    $region8: #{tpu_custom_call.1} parent=1 // pred_region
      %27 = vsyncadd [#allocation6], 0
      %s28 = sshll.u32 %s1, 4
      %s29 = int_to_ptr.hbm [resolvable:$true] %s28
      %s30 = sshll.u32 [#allocation5], 4
      %s31 = int_to_ptr.vmem [resolvable:$true] %s30
      %36 = dma.hbm_to_vmem [thread:$0]  %s29, 2048, %s31, [#allocation6], 128, 128, 8
    $region9: #{tpu_custom_call.1} parent=1 // pred_fallthru
      _
    // Predicated region
    $region10: #{tpu_custom_call.1} parent=1 // pred_check
      _
    $region11: #{tpu_custom_call.1} parent=1 // pred_check_branch
      %38 = sbr.rel (0) target = $region13
    $region12: #{tpu_custom_call.1} parent=1 // pred_region
      _
    $region13: #{tpu_custom_call.1} parent=1 // pred_fallthru
      _
    // Predicated region
    $region14: #{tpu_custom_call.1} parent=1 // pred_check
      _
    $region15: #{tpu_custom_call.1} parent=1 // pred_check_branch
      %40 = sbr.rel (0) target = $region17
    $region16: #{tpu_custom_call.1} parent=1 // pred_region
      %42 = dma.done [#allocation3], 256
    $region17: #{tpu_custom_call.1} parent=1 // pred_fallthru
      _
    // Predicated region
    $region18: #{tpu_custom_call.1} parent=1 // pred_check
      _
    $region19: #{tpu_custom_call.1} parent=1 // pred_check_branch
      %44 = sbr.rel (0) target = $region21
    $region20: #{tpu_custom_call.1} parent=1 // pred_region
      %46 = dma.done [#allocation6], 2048
    $region21: #{tpu_custom_call.1} parent=1 // pred_fallthru
      _
    %v47 = vld [vmem:[#allocation2] sm:$0xff]
    %v48 = vld [vmem:[#allocation2 + $0x8] sm:$0xff]
    %v49 = vld [vmem:[#allocation5] sm:$0xff]
    %v50 = vld [vmem:[#allocation5 + $0x8] sm:$0xff]
    %v51 = vld [vmem:[#allocation5 + $0x10] sm:$0xff]
    %v52 = vld [vmem:[#allocation5 + $0x18] sm:$0xff]
    %v53 = vld [vmem:[#allocation5 + $0x20] sm:$0xff]
    %v54 = vld [vmem:[#allocation5 + $0x28] sm:$0xff]
    %v55 = vld [vmem:[#allocation5 + $0x30] sm:$0xff]
    %v56 = vld [vmem:[#allocation5 + $0x38] sm:$0xff]
    %v57 = vld [vmem:[#allocation5 + $0x40] sm:$0xff]
    %v58 = vld [vmem:[#allocation5 + $0x48] sm:$0xff]
    %v59 = vld [vmem:[#allocation5 + $0x50] sm:$0xff]
    %v60 = vld [vmem:[#allocation5 + $0x58] sm:$0xff]
    %v61 = vld [vmem:[#allocation5 + $0x60] sm:$0xff]
    %v62 = vld [vmem:[#allocation5 + $0x68] sm:$0xff]
    %v63 = vld [vmem:[#allocation5 + $0x70] sm:$0xff]
    %v64 = vld [vmem:[#allocation5 + $0x78] sm:$0xff]
    %65 = vmatpush.xpose.msra.mxu0 %v64
    %66 = vmatpush.xpose.msra.mxu0 %v63
    %67 = vmatpush.xpose.msra.mxu0 %v62
    %68 = vmatpush.xpose.msra.mxu0 %v61
    %69 = vmatpush.xpose.msra.mxu0 %v60
    %70 = vmatpush.xpose.msra.mxu0 %v59
    %71 = vmatpush.xpose.msra.mxu0 %v58
    %72 = vmatpush.xpose.msra.mxu0 %v57
    %73 = vmatpush.xpose.msra.mxu0 %v56
    %74 = vmatpush.xpose.msra.mxu0 %v55
    %75 = vmatpush.xpose.msra.mxu0 %v54
    %76 = vmatpush.xpose.msra.mxu0 %v53
    %77 = vmatpush.xpose.msra.mxu0 %v52
    %78 = vmatpush.xpose.msra.mxu0 %v51
    %79 = vmatpush.xpose.msra.mxu0 %v50
    %80 = vmatpush.xpose.msra.mxu0 %v49
    %81 = vmatmul.f32.gmra.mxu0 %v47
    %v82 = vpop.f32.mrf.mxu0
    %v83 = vadd.f32 0.0, %v82
    %84 = vmatmul.f32.gmra.mxu0 %v48
    %v85 = vpop.f32.mrf.mxu0
    %v86 = vadd.f32 0.0, %v85
    %87 = vdwg.mxu0
    %v88 = vld [vmem:[%s2] sm:$0x1]
    %v90 = vperm.slane %v88, 0
    %v92 = vmul.f32 %v83, %v90
    %v93 = vmul.f32 %v86, %v90
    %94 = vst [vmem:[#allocation7] sm:$0xff] %v92
    %95 = vst [vmem:[#allocation7 + $0x8] sm:$0xff] %v93
    // Predicated region
    $region22: #{tpu_custom_call.1} parent=1 // pred_check
      _
    $region23: #{tpu_custom_call.1} parent=1 // pred_check_branch
      %97 = sbr.rel (0) target = $region25
    $region24: #{tpu_custom_call.1} parent=1 // pred_region
      %99 = vsyncadd [#allocation4], 0
      %s100 = sshll.u32 [#allocation7], 4
      %s101 = int_to_ptr.vmem [resolvable:$true] %s100
      %s102 = sshll.u32 %s3, 4
      %s103 = int_to_ptr.hbm [resolvable:$true] %s102
      %108 = dma.vmem_to_hbm [thread:$0]  %s101, 256, %s103, [#allocation4], 128, 128, 8
    $region25: #{tpu_custom_call.1} parent=1 // pred_fallthru
      _
    // Predicated region
    $region26: #{tpu_custom_call.1} parent=1 // pred_check
      _
    $region27: #{tpu_custom_call.1} parent=1 // pred_check_branch
      %110 = sbr.rel (0) target = $region29
    $region28: #{tpu_custom_call.1} parent=1 // pred_region
      %112 = dma.done [#allocation4], 256
    $region29: #{tpu_custom_call.1} parent=1 // pred_fallthru
      _
    %113 = vsyncpa [#allocation3], 1
    %114 = vsyncpa [#allocation6], 1
    %115 = vsyncpa [#allocation4], 1

</llo_original>
